<compile_context>
chip_gen: v7x
topology: tpu7x:2x2x1
jax: 0.10.0
libtpu: 0.0.40
codegen_flags: <defaults>
</compile_context>

<pallas_src>
import functools
import math

import jax
import jax.numpy as jnp
import numpy as np
from jax.experimental import pallas as pl
from jax.experimental.pallas import tpu as pltpu


def _round_up(n: int, m: int) -> int:
    return ((n + m - 1) // m) * m


def _packing_factor(embedding_dim: int) -> int:
    """How many rows to fold into the lane dim so k*D is a multiple of 128."""
    if embedding_dim >= 128:
        return 1
    k = 128 // math.gcd(embedding_dim, 128)   # smallest k with (k*D) % 128 == 0
    if k * embedding_dim > 1024:              # keep the packed row within a few vregs
        return 1
    return k


def _pos_enc_kernel(c_ref, o_ref, *, block_rows, k, d):
    # c_ref: (4, G) f32 hoisted per-lane constants, G = k*d
    #   row 0: inv_freq hi = f32(10000 ** (-2*i/d)), tiled k times
    #   row 1: inv_freq lo = f32 residual of the f64 value (hi/lo correction)
    #   row 2: phase       = (i % 2) * pi/2, tiled   (cos(x) == sin(x + pi/2))
    #   row 3: group index = lane // d as f32 (which of the k packed rows)
    # o_ref: (block_rows, G) f32 lane-dense tile; packed row r, lane g*d + i
    #        holds table[r*k + g, i].
    G = k * d
    inv_hi = c_ref[0:1, :]
    inv_lo = c_ref[1:2, :]
    phase = c_ref[2:3, :]
    grp = c_ref[3:4, :]

    r0 = pl.program_id(0) * block_rows
    prow = (r0 + jax.lax.broadcasted_iota(jnp.int32, (block_rows, 1), 0)
            ).astype(jnp.float32)                       # packed-row index (block_rows, 1)
    pos = prow * float(k) + grp                         # absolute position (block_rows, G)

    # One EUP transcendental per element: sin covers both sin (even cols) and
    # cos (odd cols, phase = pi/2).  The hi/lo split keeps inv_freq's f32
    # rounding error from growing with pos.
    # TODO(synk): for very large max_seq_len the f32 sin range reduction on
    # column 0 (angle == pos) still drifts vs the float64 reference.
    angle = pos * inv_hi + pos * inv_lo + phase
    val = jnp.sin(angle)
    # TODO(synk): on EUP-bound v6e/v7x, transcendental count could be cut ~4x
    # with host-precomputed sin/cos of sublane base rows + angle-addition FMAs.

    # Per original-row sum normalization: val / sqrt(sum_row(val) + 1e-5)
    # (matches the reference, including its NaN behavior if a row sum < -1e-5).
    if k == 1:
        s = jnp.sum(val, axis=-1, keepdims=True)        # (block_rows, 1)
        out = val * jax.lax.rsqrt(s + 1e-5)             # narrow rsqrt, wide VPU mul
    else:
        # Segmented reduction over the k lane groups (each group = one
        # original row): k masked XLU reduces + VPU selects.  The single wide
        # rsqrt costs the same vreg count as a narrow one at G = 128.
        s_wide = jnp.zeros((block_rows, G), jnp.float32)
        for g in range(k):
            in_g = grp == float(g)                      # (1, G)
            sg = jnp.sum(jnp.where(in_g, val, 0.0), axis=-1, keepdims=True)
            s_wide = s_wide + jnp.where(in_g, sg, 0.0)
        out = val * jax.lax.rsqrt(s_wide + 1e-5)

    o_ref[...] = out.astype(o_ref.dtype)

    # Reference zeroes the pos == 0 row; only the first tile pays for it.
    @pl.when(pl.program_id(0) == 0)
    def _():
        o_ref[0:1, 0:d] = jnp.zeros((1, d), dtype=o_ref.dtype)


@functools.lru_cache(maxsize=None)
def _build_positional_encoding(max_seq_len: int, embedding_dim: int):
    """Builds the full (max_seq_len, D) table once per config (memoized)."""
    D = embedding_dim
    k = _packing_factor(D)
    G = k * D
    R = pl.cdiv(max_seq_len, k)                 # packed rows needed

    # VMEM-budget-derived row tile: output is double-buffered, keep
    # 2 * tile_bytes <= 16 MiB so every generation stays comfortable; prefer
    # >= 4 grid steps when there is enough work (v7x two-TC sharding) while
    # keeping tiles >= 256 rows to amortize the ~0.35us per-step overhead.
    tile_budget_bytes = 8 * 1024 * 1024
    block_rows = max(8, (tile_budget_bytes // (G * 4)) // 8 * 8)
    if R >= 512:
        block_rows = min(block_rows, max(256, _round_up(pl.cdiv(R, 4), 8)))
    block_rows = max(8, min(block_rows, _round_up(R, 8)))
    R_pad = _round_up(R, block_rows)
    grid = (R_pad // block_rows,)

    # Hoisted per-lane constants, computed in float64 on the host.
    cols = np.arange(D, dtype=np.float64)
    w = 1.0 / np.power(10000.0, 2.0 * cols / D)         # matches the 2*i/D exponent
    w_hi = w.astype(np.float32)
    w_lo = (w - w_hi.astype(np.float64)).astype(np.float32)
    ph = ((cols % 2) * (math.pi / 2.0)).astype(np.float32)
    grp = np.repeat(np.arange(k, dtype=np.float32), D)
    consts = jnp.asarray(
        np.stack([np.tile(w_hi, k), np.tile(w_lo, k), np.tile(ph, k), grp], axis=0),
        dtype=jnp.float32)                              # (4, G)

    elems = R_pad * G
    kernel = functools.partial(_pos_enc_kernel, block_rows=block_rows, k=k, d=D)
    packed = pl.pallas_call(
        kernel,
        out_shape=jax.ShapeDtypeStruct((R_pad, G), jnp.float32),
        grid=grid,
        in_specs=[pl.BlockSpec((4, G), lambda i: (0, 0))],       # one packed constant input
        out_specs=pl.BlockSpec((block_rows, G), lambda i: (i, 0)),
        compiler_params=pltpu.CompilerParams(
            dimension_semantics=("parallel",),          # tiles independent (v7x 2 TCs)
            vmem_limit_bytes=32 * 1024 * 1024),
        cost_estimate=pl.CostEstimate(
            flops=(10 + 3 * k) * elems,
            transcendentals=2 * elems,
            bytes_accessed=4 * elems + 4 * 4 * G),
    )(consts)

    # Free row-major reshape back to (rows, D); drop packing/tile padding.
    # TODO(synk): downstream consumers that accept bf16 could halve the HBM
    # store bytes on store-bound v5e; kept f32 to match the module buffer.
    return packed.reshape(R_pad * k, D)[:max_seq_len]


def positional_encoding_forward(x, *, max_seq_len, embedding_dim):
    """Equivalent of PositionalEncoding(config)(x): returns pe[:x.shape[1]]."""
    L = x.shape[1]
    assert L <= max_seq_len, "sequence length exceeds max_seq_len"
    pe = _build_positional_encoding(int(max_seq_len), int(embedding_dim))
    return pe[:L]


def _reference_positional_enc(max_seq_len, embedding_dim):
    """Pure-numpy port of PositionalEncoding.get_positional_enc (float64 -> f32)."""
    pc = np.array(
        [
            [pos / np.power(10000, 2 * i / embedding_dim) for i in range(embedding_dim)]
            if pos != 0
            else np.zeros(embedding_dim)
            for pos in range(max_seq_len)
        ]
    )
    pc[1:, 0::2] = np.sin(pc[1:, 0::2])
    pc[1:, 1::2] = np.cos(pc[1:, 1::2])
    s = pc.sum(axis=-1, keepdims=True)
    pc = pc / np.sqrt(s + 1e-5)
    return pc.astype(np.float32)


if __name__ == "__main__":
    # config: max_seq_len=16, embedding_dim=32 ; input x: (B=2, L=8, D=32)
    MAX_SEQ_LEN = 16
    EMBEDDING_DIM = 32
    B, L = 2, 8

    key = jax.random.PRNGKey(0)
    x = jax.random.normal(key, (B, L, EMBEDDING_DIM), dtype=jnp.float32)

    out = positional_encoding_forward(
        x, max_seq_len=MAX_SEQ_LEN, embedding_dim=EMBEDDING_DIM
    )
    out = jax.block_until_ready(out)

    ref = _reference_positional_enc(MAX_SEQ_LEN, EMBEDDING_DIM)[:L]
    assert out.shape == (L, EMBEDDING_DIM)
    assert out.dtype == jnp.float32
    np.testing.assert_allclose(np.asarray(out), ref, rtol=1e-4, atol=1e-4)

    # Second forward with a different length hits the memoized table
    # (no kernel relaunch) and must still match.
    out2 = positional_encoding_forward(
        x[:, :4], max_seq_len=MAX_SEQ_LEN, embedding_dim=EMBEDDING_DIM
    )
    out2 = jax.block_until_ready(out2)
    np.testing.assert_allclose(np.asarray(out2), ref[:4], rtol=1e-4, atol=1e-4)

    print("KERNEL_OK")
</pallas_src>

<mosaic_0001>
module attributes {stable_mosaic.version = 11 : i64} {
  func.func @_pos_enc_kernel(%arg0: i32, %arg1: memref<4x128xf32, #tpu.memory_space<vmem>>, %arg2: memref<8x128xf32, #tpu.memory_space<vmem>>) attributes {dimension_semantics = [#tpu.dimension_semantics<parallel>], iteration_bounds = array<i64: 1>, scalar_prefetch = 0 : i64, scratch_operands = 0 : i64, tpu.core_type = #tpu.core_type<tc>, window_params = [{pipeline_mode = #tpu.pipeline_mode<synchronous>, transform_indices = @transform_0, window_bounds = array<i64: 4, 128>}, {transform_indices = @transform_1, window_bounds = array<i64: 8, 128>}]} {
    %c0 = arith.constant 0 : index
    %c0_0 = arith.constant 0 : index
    %0 = vector.load %arg1[%c0, %c0_0] : memref<4x128xf32, #tpu.memory_space<vmem>>, vector<1x128xf32>
    %c1 = arith.constant 1 : index
    %c0_1 = arith.constant 0 : index
    %1 = vector.load %arg1[%c1, %c0_1] : memref<4x128xf32, #tpu.memory_space<vmem>>, vector<1x128xf32>
    %c2 = arith.constant 2 : index
    %c0_2 = arith.constant 0 : index
    %2 = vector.load %arg1[%c2, %c0_2] : memref<4x128xf32, #tpu.memory_space<vmem>>, vector<1x128xf32>
    %c3 = arith.constant 3 : index
    %c0_3 = arith.constant 0 : index
    %3 = vector.load %arg1[%c3, %c0_3] : memref<4x128xf32, #tpu.memory_space<vmem>>, vector<1x128xf32>
    %c8_i32 = arith.constant 8 : i32
    %4 = arith.muli %arg0, %c8_i32 : i32
    %5 = tpu.iota {dimensions = array<i32: 0>} : vector<8x1xi32>
    %6 = vector.broadcast %4 : i32 to vector<8x1xi32>
    %7 = arith.addi %6, %5 : vector<8x1xi32>
    %8 = arith.sitofp %7 : vector<8x1xi32> to vector<8x1xf32>
    %cst = arith.constant 4.000000e+00 : f32
    %9 = vector.broadcast %cst : f32 to vector<8x1xf32>
    %10 = arith.mulf %8, %9 : vector<8x1xf32>
    %11 = vector.broadcast %10 : vector<8x1xf32> to vector<8x128xf32>
    %12 = vector.broadcast %3 : vector<1x128xf32> to vector<8x128xf32>
    %13 = arith.addf %11, %12 : vector<8x128xf32>
    %14 = vector.broadcast %0 : vector<1x128xf32> to vector<8x128xf32>
    %15 = arith.mulf %13, %14 : vector<8x128xf32>
    %16 = vector.broadcast %1 : vector<1x128xf32> to vector<8x128xf32>
    %17 = arith.mulf %13, %16 : vector<8x128xf32>
    %18 = arith.addf %15, %17 : vector<8x128xf32>
    %19 = vector.broadcast %2 : vector<1x128xf32> to vector<8x128xf32>
    %20 = arith.addf %18, %19 : vector<8x128xf32>
    %21 = math.sin %20 : vector<8x128xf32>
    %cst_4 = arith.constant 0.000000e+00 : f32
    %22 = vector.broadcast %cst_4 : f32 to vector<8x128xf32>
    %cst_5 = arith.constant 0.000000e+00 : f32
    %23 = vector.broadcast %cst_5 : f32 to vector<1x128xf32>
    %24 = arith.cmpf oeq, %3, %23 : vector<1x128xf32>
    %cst_6 = arith.constant 0.000000e+00 : f32
    %25 = vector.shape_cast %24 : vector<1x128xi1> to vector<1x128xi1>
    %26 = vector.broadcast %25 : vector<1x128xi1> to vector<8x128xi1>
    %27 = vector.broadcast %cst_6 : f32 to vector<8x128xf32>
    %28 = arith.select %26, %21, %27 : vector<8x128xi1>, vector<8x128xf32>
    %cst_7 = arith.constant dense<0.000000e+00> : vector<8xf32>
    %29 = vector.multi_reduction <add>, %28, %cst_7 [1] : vector<8x128xf32> to vector<8xf32>
    %30 = vector.shape_cast %29 : vector<8xf32> to vector<8x1xf32>
    %cst_8 = arith.constant 0.000000e+00 : f32
    %31 = vector.shape_cast %24 : vector<1x128xi1> to vector<1x128xi1>
    %32 = vector.broadcast %31 : vector<1x128xi1> to vector<8x128xi1>
    %33 = vector.shape_cast %30 : vector<8x1xf32> to vector<8x1xf32>
    %34 = vector.broadcast %33 : vector<8x1xf32> to vector<8x128xf32>
    %35 = vector.broadcast %cst_8 : f32 to vector<8x128xf32>
    %36 = arith.select %32, %34, %35 : vector<8x128xi1>, vector<8x128xf32>
    %37 = arith.addf %22, %36 : vector<8x128xf32>
    %cst_9 = arith.constant 1.000000e+00 : f32
    %38 = vector.broadcast %cst_9 : f32 to vector<1x128xf32>
    %39 = arith.cmpf oeq, %3, %38 : vector<1x128xf32>
    %cst_10 = arith.constant 0.000000e+00 : f32
    %40 = vector.shape_cast %39 : vector<1x128xi1> to vector<1x128xi1>
    %41 = vector.broadcast %40 : vector<1x128xi1> to vector<8x128xi1>
    %42 = vector.broadcast %cst_10 : f32 to vector<8x128xf32>
    %43 = arith.select %41, %21, %42 : vector<8x128xi1>, vector<8x128xf32>
    %cst_11 = arith.constant dense<0.000000e+00> : vector<8xf32>
    %44 = vector.multi_reduction <add>, %43, %cst_11 [1] : vector<8x128xf32> to vector<8xf32>
    %45 = vector.shape_cast %44 : vector<8xf32> to vector<8x1xf32>
    %cst_12 = arith.constant 0.000000e+00 : f32
    %46 = vector.shape_cast %39 : vector<1x128xi1> to vector<1x128xi1>
    %47 = vector.broadcast %46 : vector<1x128xi1> to vector<8x128xi1>
    %48 = vector.shape_cast %45 : vector<8x1xf32> to vector<8x1xf32>
    %49 = vector.broadcast %48 : vector<8x1xf32> to vector<8x128xf32>
    %50 = vector.broadcast %cst_12 : f32 to vector<8x128xf32>
    %51 = arith.select %47, %49, %50 : vector<8x128xi1>, vector<8x128xf32>
    %52 = arith.addf %37, %51 : vector<8x128xf32>
    %cst_13 = arith.constant 2.000000e+00 : f32
    %53 = vector.broadcast %cst_13 : f32 to vector<1x128xf32>
    %54 = arith.cmpf oeq, %3, %53 : vector<1x128xf32>
    %cst_14 = arith.constant 0.000000e+00 : f32
    %55 = vector.shape_cast %54 : vector<1x128xi1> to vector<1x128xi1>
    %56 = vector.broadcast %55 : vector<1x128xi1> to vector<8x128xi1>
    %57 = vector.broadcast %cst_14 : f32 to vector<8x128xf32>
    %58 = arith.select %56, %21, %57 : vector<8x128xi1>, vector<8x128xf32>
    %cst_15 = arith.constant dense<0.000000e+00> : vector<8xf32>
    %59 = vector.multi_reduction <add>, %58, %cst_15 [1] : vector<8x128xf32> to vector<8xf32>
    %60 = vector.shape_cast %59 : vector<8xf32> to vector<8x1xf32>
    %cst_16 = arith.constant 0.000000e+00 : f32
    %61 = vector.shape_cast %54 : vector<1x128xi1> to vector<1x128xi1>
    %62 = vector.broadcast %61 : vector<1x128xi1> to vector<8x128xi1>
    %63 = vector.shape_cast %60 : vector<8x1xf32> to vector<8x1xf32>
    %64 = vector.broadcast %63 : vector<8x1xf32> to vector<8x128xf32>
    %65 = vector.broadcast %cst_16 : f32 to vector<8x128xf32>
    %66 = arith.select %62, %64, %65 : vector<8x128xi1>, vector<8x128xf32>
    %67 = arith.addf %52, %66 : vector<8x128xf32>
    %cst_17 = arith.constant 3.000000e+00 : f32
    %68 = vector.broadcast %cst_17 : f32 to vector<1x128xf32>
    %69 = arith.cmpf oeq, %3, %68 : vector<1x128xf32>
    %cst_18 = arith.constant 0.000000e+00 : f32
    %70 = vector.shape_cast %69 : vector<1x128xi1> to vector<1x128xi1>
    %71 = vector.broadcast %70 : vector<1x128xi1> to vector<8x128xi1>
    %72 = vector.broadcast %cst_18 : f32 to vector<8x128xf32>
    %73 = arith.select %71, %21, %72 : vector<8x128xi1>, vector<8x128xf32>
    %cst_19 = arith.constant dense<0.000000e+00> : vector<8xf32>
    %74 = vector.multi_reduction <add>, %73, %cst_19 [1] : vector<8x128xf32> to vector<8xf32>
    %75 = vector.shape_cast %74 : vector<8xf32> to vector<8x1xf32>
    %cst_20 = arith.constant 0.000000e+00 : f32
    %76 = vector.shape_cast %69 : vector<1x128xi1> to vector<1x128xi1>
    %77 = vector.broadcast %76 : vector<1x128xi1> to vector<8x128xi1>
    %78 = vector.shape_cast %75 : vector<8x1xf32> to vector<8x1xf32>
    %79 = vector.broadcast %78 : vector<8x1xf32> to vector<8x128xf32>
    %80 = vector.broadcast %cst_20 : f32 to vector<8x128xf32>
    %81 = arith.select %77, %79, %80 : vector<8x128xi1>, vector<8x128xf32>
    %82 = arith.addf %67, %81 : vector<8x128xf32>
    %cst_21 = arith.constant 9.99999974E-6 : f32
    %83 = vector.broadcast %cst_21 : f32 to vector<8x128xf32>
    %84 = arith.addf %82, %83 : vector<8x128xf32>
    %85 = math.rsqrt %84 : vector<8x128xf32>
    %86 = arith.mulf %21, %85 : vector<8x128xf32>
    %c0_22 = arith.constant 0 : index
    %c0_23 = arith.constant 0 : index
    %87 = vector.load %arg2[%c0_22, %c0_23] : memref<8x128xf32, #tpu.memory_space<vmem>>, vector<8x128xf32>
    tpu.vector_store %arg2[%c0_22, %c0_23], %86 {strides = array<i32>} : memref<8x128xf32, #tpu.memory_space<vmem>>, vector<8x128xf32>,
    %c0_i32 = arith.constant 0 : i32
    %88 = arith.cmpi eq, %arg0, %c0_i32 : i32
    %89 = arith.extui %88 : i1 to i32
    %c0_i32_24 = arith.constant 0 : i32
    %90 = arith.cmpi ne, %89, %c0_i32_24 : i32
    scf.if %90 {
      %cst_25 = arith.constant 0.000000e+00 : f32
      %91 = vector.broadcast %cst_25 : f32 to vector<1x32xf32>
      %c0_26 = arith.constant 0 : index
      %c0_27 = arith.constant 0 : index
      %92 = vector.load %arg2[%c0_26, %c0_27] : memref<8x128xf32, #tpu.memory_space<vmem>>, vector<1x32xf32>
      tpu.vector_store %arg2[%c0_26, %c0_27], %91 {strides = array<i32>} : memref<8x128xf32, #tpu.memory_space<vmem>>, vector<1x32xf32>,
    } else {
    }
    return
  }
  func.func @transform_0(%arg0: i32) -> (i32, i32) {
    %c0_i32 = arith.constant 0 : i32
    %c0_i32_0 = arith.constant 0 : i32
    %c0_i32_1 = arith.constant 0 : i32
    return %c0_i32, %c0_i32_0 : i32, i32
  }
  func.func @transform_1(%arg0: i32) -> (i32, i32) {
    %c0_i32 = arith.constant 0 : i32
    %c0_i32_0 = arith.constant 0 : i32
    return %arg0, %c0_i32 : i32, i32
  }
}

</mosaic_0001>

<llo_original>
// kernel: tpu_custom_call.1
$region0: #{tpu_custom_call.1}
  #allocation0 [shape = 'u32[]', space=smem, size = 0x4, offset = 0x4, fixed_abs, tag = 'smem constant byte address 0x4 - core index']
  #allocation1 [shape = 'u32[144,128]{1,0:T(1,128)}', space=vmem, size = 0x12000, scoped, tag = 'internal scratch']
  %s0 = inlined_call_operand.hbm [shape: f32[4,128], index: 0, kind: input, shape index: {}]
  %s1 = inlined_call_operand.hbm [shape: f32[8,128], index: 1, kind: output, shape index: {}]
  %s2 = sld [smem:[#allocation0]]
  $region22: #{tpu_custom_call.1} parent=0
    _
  %s4 = ssub.s32 1, %s2
  %s5 = scalar_select 0, %s4, %s2
  $region1: #{tpu_custom_call.1} parent=0
    #allocation2 [shape = 'u8[2048]{0}', space=vmem, size = 0x800, scoped, tag = 'input window, operand 0, single buffered']
    #allocation3 [shape = 's32[1]{0}', space=sflag, size = 0x4, scoped, tag = 'scoped memory for tpu_custom_call.1']
    #allocation4 [shape = 's32[1]{0}', space=sflag, size = 0x4, scoped, tag = 'scoped memory for tpu_custom_call.1']
    #allocation5 [shape = 'u8[4096]{0}', space=vmem, size = 0x1000, scoped, tag = 'output window, operand 0, single buffered']
    %6 = vsyncpa [#allocation3], 0
    %7 = vsyncpa [#allocation4], 0
    // Predicated region
    $region2: #{tpu_custom_call.1} parent=1 // pred_check
      _
    $region3: #{tpu_custom_call.1} parent=1 // pred_check_branch
      %9 = sbr.rel (0) target = $region5
    $region4: #{tpu_custom_call.1} parent=1 // pred_region
      %s11 = ssub.s32 64, 64
      %12 = vsyncadd [#allocation3], %s11
      %s14 = sshll.u32 [#allocation2], 4
      %s15 = int_to_ptr.vmem [resolvable:$true] %s14
      %17 = dma.hbm_to_vmem [thread:$0]  %s0, 64, %s15, [#allocation3]
    $region5: #{tpu_custom_call.1} parent=1 // pred_fallthru
      _
    // Predicated region
    $region6: #{tpu_custom_call.1} parent=1 // pred_check
      _
    $region7: #{tpu_custom_call.1} parent=1 // pred_check_branch
      %19 = sbr.rel (0) target = $region9
    $region8: #{tpu_custom_call.1} parent=1 // pred_region
      %20 = dma.done [#allocation3], 64
    $region9: #{tpu_custom_call.1} parent=1 // pred_fallthru
      _
    %v21 = vld [vmem:[#allocation2] sm:$0x1]
    %v22 = vld [vmem:[#allocation2 + $0x1] sm:$0x1]
    %v23 = vld [vmem:[#allocation2 + $0x2] sm:$0x1]
    %v24 = vld [vmem:[#allocation2 + $0x3] sm:$0x1]
    %s25 = smul.u32 0, 8
    %v26 = vlaneseq
    %v27 = vshrl.u32 %v26, 7
    %v28 = vstv %s25
    %v29 = vadd.s32 %v28, %v27
    %v30 = vcvt.s32.f32 %v29
    %v31 = vmul.f32 %v30, 4.0
    %v32 = vlaneseq
    %v33 = vshrl.u32 %v32, 7
    %v34 = vsub.s32 0, %v33
    %v35 = vrot.slane %v24, %v34
    %v36 = vadd.f32 %v31, %v35
    %v37 = vlaneseq
    %v38 = vshrl.u32 %v37, 7
    %v39 = vsub.s32 0, %v38
    %v40 = vrot.slane %v21, %v39
    %v41 = vmul.f32 %v36, %v40
    %v42 = vlaneseq
    %v43 = vshrl.u32 %v42, 7
    %v44 = vsub.s32 0, %v43
    %v45 = vrot.slane %v22, %v44
    %v46 = vmul.f32 %v36, %v45
    %v47 = vadd.f32 %v41, %v46
    %v48 = vlaneseq
    %v49 = vshrl.u32 %v48, 7
    %v50 = vsub.s32 0, %v49
    %v51 = vrot.slane %v23, %v50
    %v52 = vadd.f32 %v47, %v51
    %v53 = vand.u32 2147483647, %v52
    %vm54 = vcmp.le.f32.partialorder %v53, 0.7853982
    %vm55 = vcmp.lt.s32.totalorder %v52, 0
    %v56 = vand.u32 %v52, 2139095040
    %v57 = vshrl.u32 %v56, 23
    %v58 = vsub.s32 %v57, 127
    %v59 = vand.u32 2147483647, %v52
    %v60 = vand.u32 %v59, 8388607
    %v61 = vor.u32 %v60, 8388608
    %v62 = vsub.s32 0, %v61
    %v63 = vadd.s32 %v58, 1
    %vm64 = vcmp.gt.s32.totalorder %v63, 0
    %v65 = vsel %vm64, %v63, 0
    %v66 = vshrl.u32 %v65, 5
    %v67 = vand.u32 %v65, 31
    %v68 = vsub.s32 32, %v67
    %v69 = vshrl.u32 683565275, %v68
    %v70 = vshll.u32 683565275, %v67
    %v71 = vshrl.u32 2475754826, %v68
    %v72 = vor.u32 %v70, %v71
    %v73 = vshll.u32 2475754826, %v67
    %v74 = vshrl.u32 2131351028, %v68
    %v75 = vor.u32 %v73, %v74
    %v76 = vshll.u32 2131351028, %v67
    %v77 = vshrl.u32 2102212464, %v68
    %v78 = vor.u32 %v76, %v77
    %v79 = vshll.u32 2102212464, %v67
    %v80 = vshrl.u32 920167782, %v68
    %v81 = vor.u32 %v79, %v80
    %v82 = vshll.u32 920167782, %v67
    %v83 = vshrl.u32 1326507024, %v68
    %v84 = vor.u32 %v82, %v83
    %vm85 = vcmp.lt.s32.totalorder %v66, 1
    %vm86 = vcmp.lt.s32.totalorder %v66, 2
    %vm87 = vcmp.lt.s32.totalorder %v66, 3
    %vm88 = vcmp.lt.s32.totalorder %v66, 4
    %v89 = vsel %vm85, %v69, %v72
    %v90 = vsel %vm88, %v78, 2102212464
    %v91 = vsel %vm87, %v75, %v90
    %v92 = vsel %vm86, %v89, %v91
    %v93 = vsel %vm85, %v72, %v75
    %v94 = vsel %vm88, %v81, 920167782
    %v95 = vsel %vm87, %v78, %v94
    %v96 = vsel %vm86, %v93, %v95
    %v97 = vsel %vm85, %v75, %v78
    %v98 = vsel %vm88, %v84, 1326507024
    %v99 = vsel %vm87, %v81, %v98
    %v100 = vsel %vm86, %v97, %v99
    %v101 = vshll.u32 %v61, 8
    %v102 = vmul.u32.u64.compose %v101, %v100
    %v103 = vextract.low.u32 %v102
    %v104 = vextract.high.u32 %v102
    %v105 = vmul.u32.u64.compose %v101, %v96
    %v106 = vextract.low.u32 %v105
    %v107 = vextract.high.u32 %v105
    %v108 = vmul.u32 %v101, %v92
    %v109 = vadd.s32 %v104, %v106
    %vm110 = vc.u32 %v104, %v106
    %v111 = vadd.s32 %v107, 1
    %v112 = vsel %vm110, %v111, %v107
    %v113 = vadd.s32 %v108, %v112
    %v114 = vadd.s32 %v113, 536870912
    %v115 = vshrl.u32 %v114, 30
    %v116 = vshll.u32 %v115, 30
    %v117 = vsub.s32 %v113, %v116
    %vm118 = vcmp.lt.s32.totalorder %v117, 0
    %v119 = vsub.s32 0, %v117
    %v120 = vsel %vm118, %v119, %v117
    %v121 = vclz %v120
    %v122 = vsub.s32 %v121, 2
    %vm123 = vcmp.gt.s32.totalorder 0, %v122
    %v124 = vsel %vm123, 0, %v122
    %v125 = vsub.s32 32, %v124
    %v126 = vshll.u32 %v117, %v124
    %v127 = vshrl.u32 %v109, %v125
    %v128 = vor.u32 %v126, %v127
    %v129 = vsub.s32 4294967266, %v124
    %v130 = vadd.s32 %v129, 127
    %v131 = vshll.u32 %v130, 23
    %v132 = vor.u32 4788187, %v131
    %v133 = vand.u32 2147483647, %v132
    %v135 = vcvt.s32.f32 %v128
    %v136 = vmul.f32 %v135, %v133
    %v137 = vxor.u32 %v136, 2147483648
    %v138 = vsel %vm55, %v137, %v136
    %v139 = vsub.s32 4, %v115
    %v140 = vsel %vm55, %v139, %v115
    %v141 = vsel %vm54, %v52, %v138
    %v142 = vsel %vm54, 0, %v140
    %v143 = vcosq.f32.pop %v141
    %v144 = vsinq.f32.pop %v141
    %vm145 = vweird.f32 %v52
    %v146 = vadd.s32 %v142, 3
    %v147 = vand.u32 %v146, 3
    %vm148 = vcmp.lt.s32.totalorder %v147, 2
    %vm149 = vcmp.eq.s32.totalorder %v147, 0
    %v150 = vxor.u32 %v144, 2147483648
    %v151 = vsel %vm149, %v143, %v150
    %vm152 = vcmp.eq.s32.totalorder %v147, 2
    %v153 = vxor.u32 %v143, 2147483648
    %v154 = vsel %vm152, %v153, %v144
    %v155 = vsel %vm148, %v151, %v154
    %v156 = vsel %vm145, nan, %v155
    %vm157 = vcmp.eq.f32.partialorder %v24, 0.0
    %v158 = vsel %vm157, 1, 0
    %v159 = vlaneseq
    %v160 = vshrl.u32 %v159, 7
    %v161 = vsub.s32 0, %v160
    %v162 = vrot.slane %v158, %v161
    %vm163 = vcmp.eq.s32.totalorder %v162, 1
    %v164 = vsel %vm163, %v156, 0.0
    %165 = vadd.xlane.f32.xlu0 %v164
    %v166 = vpop.xlane.xlu0 %165
    %v167 = vsel %vm163, %v166, 0.0
    %v168 = vadd.f32 %v167, 0.0
    %vm169 = vcmp.eq.f32.partialorder %v24, 1.0
    %v170 = vsel %vm169, 1, 0
    %v171 = vlaneseq
    %v172 = vshrl.u32 %v171, 7
    %v173 = vsub.s32 0, %v172
    %v174 = vrot.slane %v170, %v173
    %vm175 = vcmp.eq.s32.totalorder %v174, 1
    %v176 = vsel %vm175, %v156, 0.0
    %177 = vadd.xlane.f32.xlu0 %v176
    %v178 = vpop.xlane.xlu0 %177
    %v179 = vsel %vm175, %v178, 0.0
    %v180 = vadd.f32 %v168, %v179
    %vm181 = vcmp.eq.f32.partialorder %v24, 2.0
    %v182 = vsel %vm181, 1, 0
    %v183 = vlaneseq
    %v184 = vshrl.u32 %v183, 7
    %v185 = vsub.s32 0, %v184
    %v186 = vrot.slane %v182, %v185
    %vm187 = vcmp.eq.s32.totalorder %v186, 1
    %v188 = vsel %vm187, %v156, 0.0
    %189 = vadd.xlane.f32.xlu0 %v188
    %v190 = vpop.xlane.xlu0 %189
    %v191 = vsel %vm187, %v190, 0.0
    %v192 = vadd.f32 %v180, %v191
    %vm193 = vcmp.eq.f32.partialorder %v24, 3.0
    %v194 = vsel %vm193, 1, 0
    %v195 = vlaneseq
    %v196 = vshrl.u32 %v195, 7
    %v197 = vsub.s32 0, %v196
    %v198 = vrot.slane %v194, %v197
    %vm199 = vcmp.eq.s32.totalorder %v198, 1
    %v200 = vsel %vm199, %v156, 0.0
    %201 = vadd.xlane.f32.xlu0 %v200
    %v202 = vpop.xlane.xlu0 %201
    %v203 = vsel %vm199, %v202, 0.0
    %v204 = vadd.f32 %v192, %v203
    %v205 = vadd.f32 %v204, 1e-05
    %v206 = vrsqrt.pop %v205
    %v207 = vmul.f32 %v156, %v206
    %208 = vst [vmem:[#allocation5] sm:$0xff] %v207
    %p209 = scmp.eq.s32.totalorder 0, 0
    // Predicated region
    $region10: #{tpu_custom_call.1} parent=1 // pred_check
      %p210 = pneg %p209
    $region11: #{tpu_custom_call.1} parent=1 // pred_check_branch
      %212 = sbr.rel (%p210) target = $region13
    $region12: #{tpu_custom_call.1} parent=1 // pred_region
      %vm213 = vcmask 253952
      %214 = vst.msk [vmem:[#allocation5] sm:$0x1] %vm213, 0.0
    $region13: #{tpu_custom_call.1} parent=1 // pred_fallthru
      _
    // Predicated region
    $region14: #{tpu_custom_call.1} parent=1 // pred_check
      _
    $region15: #{tpu_custom_call.1} parent=1 // pred_check_branch
      %216 = sbr.rel (0) target = $region17
    $region16: #{tpu_custom_call.1} parent=1 // pred_region
      %s218 = ssub.s32 128, 128
      %219 = vsyncadd [#allocation4], %s218
      %s221 = sshll.u32 [#allocation5], 4
      %s222 = int_to_ptr.vmem [resolvable:$true] %s221
      %224 = dma.vmem_to_hbm [thread:$0]  %s222, 128, %s1, [#allocation4]
    $region17: #{tpu_custom_call.1} parent=1 // pred_fallthru
      _
    // Predicated region
    $region18: #{tpu_custom_call.1} parent=1 // pred_check
      _
    $region19: #{tpu_custom_call.1} parent=1 // pred_check_branch
      %226 = sbr.rel (0) target = $region21
    $region20: #{tpu_custom_call.1} parent=1 // pred_region
      %227 = dma.done [#allocation4], 128
    $region21: #{tpu_custom_call.1} parent=1 // pred_fallthru
      _
    %228 = vsyncpa [#allocation3], 1
    %229 = vsyncpa [#allocation4], 1

</llo_original>
